<compile_context>
chip_gen: v7x
topology: tpu7x:2x2x1
jax: 0.10.0
libtpu: 0.0.40
codegen_flags: <defaults>
</compile_context>

<pallas_src>
import jax
import jax.numpy as jnp
from jax.experimental import pallas as pl
from jax.experimental.pallas import tpu as pltpu

_LANE = 128
_SUBLANE = 8
_TARGET_TILE_BYTES = 2 * 1024 * 1024  # ~2 MiB/tile: safe on v5e/v6e/v7x with
                                      # 2 arrays x 2 pipeline buffers.


def _copy_slab_kernel(x_ref, o_ref):
    # Identity copy of one lane-dense (TR, L) tile.
    o_ref[...] = x_ref[...]


def _choose_2d_layout(total_elems):
    """Pick a lane-dense (rows, lane_width) factorization of the flat tensor."""
    for lane_w in (1024, 512, 256, _LANE):
        if total_elems % lane_w == 0:
            return total_elems // lane_w, lane_w
    return None


def _pallas_copy_squeeze(x: jax.Array, dim: int) -> jax.Array:
    """Materialized squeeze: stream the data through a lane-dense copy kernel."""
    out_shape = x.shape[:dim] + x.shape[dim + 1:]
    total = x.size
    if total == 0:
        return jnp.squeeze(x, axis=dim)

    layout = _choose_2d_layout(total)
    if layout is None:
        # TODO(synk): totals not divisible by 128 would force masked stores in
        # the kernel; fall back to the free metadata-only squeeze instead.
        return jnp.squeeze(x, axis=dim)

    rows, lane_w = layout
    itemsize = jnp.dtype(x.dtype).itemsize
    slab = x.reshape(rows, lane_w)  # metadata-only reshape of contiguous data

    # Rows per tile: ~2 MiB, multiple of the 8-row sublane granule, or the
    # full row extent if the whole slab already fits in one tile.
    target_rows = max(_SUBLANE, _TARGET_TILE_BYTES // (lane_w * itemsize))
    if rows <= target_rows:
        tile_rows = rows
    else:
        tile_rows = (min(target_rows, rows) // _SUBLANE) * _SUBLANE

    grid = (pl.cdiv(rows, tile_rows),)

    out = pl.pallas_call(
        _copy_slab_kernel,
        out_shape=jax.ShapeDtypeStruct((rows, lane_w), x.dtype),
        grid=grid,
        in_specs=[pl.BlockSpec((tile_rows, lane_w), lambda i: (i, 0))],
        out_specs=pl.BlockSpec((tile_rows, lane_w), lambda i: (i, 0)),
        compiler_params=pltpu.CompilerParams(
            dimension_semantics=("parallel",),
            vmem_limit_bytes=32 * 1024 * 1024,
        ),
        cost_estimate=pl.CostEstimate(
            flops=0,
            transcendentals=0,
            bytes_accessed=2 * total * itemsize,
        ),
    )(slab)
    return out.reshape(out_shape)


def squeeze_layer(x: jax.Array, dim: int = 1, *, materialize_copy: bool = False) -> jax.Array:
    """Equivalent of SqueezeLayer(dim).forward(x) == torch.squeeze(x, dim).

    Default path is the free, layout-preserving metadata squeeze (no HBM
    traffic).  Set materialize_copy=True to force the data through the
    lane-dense Pallas copy kernel (only useful if a fresh buffer is required).
    """
    if x.ndim == 0:
        return x
    if dim < 0:
        dim += x.ndim
    if dim < 0 or dim >= x.ndim or x.shape[dim] != 1:
        # torch.squeeze on a non-size-1 (or out-of-range) dim is a no-op.
        return x
    if not materialize_copy:
        return jnp.squeeze(x, axis=dim)
    return _pallas_copy_squeeze(x, dim)


if __name__ == "__main__":
    key = jax.random.PRNGKey(0)

    # NCHW input with size-1 channel dim, as SqueezeLayer(dim=1) expects.
    x = jax.random.normal(key, (2, 1, 16, 16), dtype=jnp.float32)
    ref = jnp.squeeze(x, axis=1)

    # Hot path: free metadata-only squeeze.
    y_free = jax.block_until_ready(squeeze_layer(x, dim=1))
    assert y_free.shape == (2, 16, 16) and y_free.dtype == x.dtype
    assert jnp.array_equal(y_free, ref)

    # Kernelized path: lane-dense Pallas copy (run once to validate the kernel).
    y_kernel = jax.block_until_ready(squeeze_layer(x, dim=1, materialize_copy=True))
    assert y_kernel.shape == (2, 16, 16) and y_kernel.dtype == x.dtype
    assert jnp.array_equal(y_kernel, ref)

    # Larger case exercising the lane-dense tiling (W multiple of 128).
    x2 = jax.random.normal(key, (2, 1, 64, 128), dtype=jnp.float32)
    y2 = jax.block_until_ready(squeeze_layer(x2, dim=1, materialize_copy=True))
    assert jnp.array_equal(y2, jnp.squeeze(x2, axis=1))

    # Non-size-1 dim: torch.squeeze is a no-op.
    x3 = jax.random.normal(key, (2, 4, 16, 16), dtype=jnp.float32)
    y3 = jax.block_until_ready(squeeze_layer(x3, dim=1))
    assert y3.shape == x3.shape and jnp.array_equal(y3, x3)

    print("KERNEL_OK")
</pallas_src>

<mosaic_0001>
module attributes {stable_mosaic.version = 11 : i64} {
  func.func @_copy_slab_kernel(%arg0: i32, %arg1: memref<1x512xf32, #tpu.memory_space<vmem>>, %arg2: memref<1x512xf32, #tpu.memory_space<vmem>>) attributes {dimension_semantics = [#tpu.dimension_semantics<parallel>], iteration_bounds = array<i64: 1>, scalar_prefetch = 0 : i64, scratch_operands = 0 : i64, tpu.core_type = #tpu.core_type<tc>, window_params = [{transform_indices = @transform_0, window_bounds = array<i64: 1, 512>}, {transform_indices = @transform_1, window_bounds = array<i64: 1, 512>}]} {
    %c0 = arith.constant 0 : index
    %c0_0 = arith.constant 0 : index
    %0 = vector.load %arg1[%c0, %c0_0] : memref<1x512xf32, #tpu.memory_space<vmem>>, vector<1x512xf32>
    %c0_1 = arith.constant 0 : index
    %c0_2 = arith.constant 0 : index
    %1 = vector.load %arg2[%c0_1, %c0_2] : memref<1x512xf32, #tpu.memory_space<vmem>>, vector<1x512xf32>
    tpu.vector_store %arg2[%c0_1, %c0_2], %0 {strides = array<i32>} : memref<1x512xf32, #tpu.memory_space<vmem>>, vector<1x512xf32>,
    return
  }
  func.func @transform_0(%arg0: i32) -> (i32, i32) {
    %c0_i32 = arith.constant 0 : i32
    %c0_i32_0 = arith.constant 0 : i32
    return %arg0, %c0_i32 : i32, i32
  }
  func.func @transform_1(%arg0: i32) -> (i32, i32) {
    %c0_i32 = arith.constant 0 : i32
    %c0_i32_0 = arith.constant 0 : i32
    return %arg0, %c0_i32 : i32, i32
  }
}

</mosaic_0001>

<llo_original>
// kernel: tpu_custom_call.1
$region0: #{tpu_custom_call.1}
  #allocation0 [shape = 'u32[]', space=smem, size = 0x4, offset = 0x4, fixed_abs, tag = 'smem constant byte address 0x4 - core index']
  #allocation1 [shape = 'u32[144,128]{1,0:T(1,128)}', space=vmem, size = 0x12000, scoped, tag = 'internal scratch']
  %s0 = inlined_call_operand.hbm [shape: f32[1,512], index: 0, kind: input, shape index: {}]
  %s1 = inlined_call_operand.hbm [shape: f32[1,512], index: 1, kind: output, shape index: {}]
  %s2 = sld [smem:[#allocation0]]
  $region18: #{tpu_custom_call.1} parent=0
    _
  %s4 = ssub.s32 1, %s2
  %s5 = scalar_select 0, %s4, %s2
  $region1: #{tpu_custom_call.1} parent=0
    #allocation2 [shape = 'u8[2048]{0}', space=vmem, size = 0x800, scoped, tag = 'input window, operand 0, single buffered']
    #allocation3 [shape = 's32[1]{0}', space=sflag, size = 0x4, scoped, tag = 'scoped memory for tpu_custom_call.1']
    #allocation4 [shape = 's32[1]{0}', space=sflag, size = 0x4, scoped, tag = 'scoped memory for tpu_custom_call.1']
    #allocation5 [shape = 'u8[2048]{0}', space=vmem, size = 0x800, scoped, tag = 'output window, operand 0, single buffered']
    %6 = vsyncpa [#allocation3], 0
    %7 = vsyncpa [#allocation4], 0
    // Predicated region
    $region2: #{tpu_custom_call.1} parent=1 // pred_check
      _
    $region3: #{tpu_custom_call.1} parent=1 // pred_check_branch
      %9 = sbr.rel (0) target = $region5
    $region4: #{tpu_custom_call.1} parent=1 // pred_region
      %s11 = ssub.s32 64, 64
      %12 = vsyncadd [#allocation3], %s11
      %s14 = sshll.u32 [#allocation2], 4
      %s15 = int_to_ptr.vmem [resolvable:$true] %s14
      %17 = dma.hbm_to_vmem [thread:$0]  %s0, 64, %s15, [#allocation3]
    $region5: #{tpu_custom_call.1} parent=1 // pred_fallthru
      _
    // Predicated region
    $region6: #{tpu_custom_call.1} parent=1 // pred_check
      _
    $region7: #{tpu_custom_call.1} parent=1 // pred_check_branch
      %19 = sbr.rel (0) target = $region9
    $region8: #{tpu_custom_call.1} parent=1 // pred_region
      %20 = dma.done [#allocation3], 64
    $region9: #{tpu_custom_call.1} parent=1 // pred_fallthru
      _
    %v21 = vld [vmem:[#allocation2] sm:$0xf]
    %v22 = vlaneseq
    %vm23 = vcmp.ge.s32.totalorder %v22, 0
    %vm24 = vcmp.lt.s32.totalorder %v22, 512
    %vm25 = vmand %vm23, %vm24
    %26 = vst.msk [vmem:[#allocation5] sm:$0xf] %vm25, %v21
    // Predicated region
    $region10: #{tpu_custom_call.1} parent=1 // pred_check
      _
    $region11: #{tpu_custom_call.1} parent=1 // pred_check_branch
      %28 = sbr.rel (0) target = $region13
    $region12: #{tpu_custom_call.1} parent=1 // pred_region
      %s30 = ssub.s32 64, 64
      %31 = vsyncadd [#allocation4], %s30
      %s33 = sshll.u32 [#allocation5], 4
      %s34 = int_to_ptr.vmem [resolvable:$true] %s33
      %36 = dma.vmem_to_hbm [thread:$0]  %s34, 64, %s1, [#allocation4]
    $region13: #{tpu_custom_call.1} parent=1 // pred_fallthru
      _
    // Predicated region
    $region14: #{tpu_custom_call.1} parent=1 // pred_check
      _
    $region15: #{tpu_custom_call.1} parent=1 // pred_check_branch
      %38 = sbr.rel (0) target = $region17
    $region16: #{tpu_custom_call.1} parent=1 // pred_region
      %39 = dma.done [#allocation4], 64
    $region17: #{tpu_custom_call.1} parent=1 // pred_fallthru
      _
    %40 = vsyncpa [#allocation3], 1
    %41 = vsyncpa [#allocation4], 1

</llo_original>
